<compile_context>
chip_gen: v6e
topology: v6e:2x2x1
jax: 0.10.0
libtpu: 0.0.40
codegen_flags: <defaults>
</compile_context>

<pallas_src>
import functools

import jax
import jax.numpy as jnp
from jax import lax
from jax.experimental import pallas as pl
from jax.experimental.pallas import tpu as pltpu


def _round_up(x, m):
    return (x + m - 1) // m * m


def _cdiv(a, b):
    return (a + b - 1) // b


def _vmem_capacity_bytes():
    """Generation-aware VMEM capacity (64 MiB v7x, 128 MiB v5e/v6e)."""
    try:
        cap = int(pltpu.get_tpu_info().vmem_capacity_bytes)
        if cap > 0:
            return cap
    except Exception:
        pass
    return 64 * 1024 * 1024          # v7x-safe fallback


def _tensorcores_per_chip():
    """Best-effort TC count: 2 on v7x, 1 on v5e/v6e.  Correctness never depends on it."""
    try:
        info = pltpu.get_tpu_info()
        for name in ("num_cores", "num_tensorcores", "tensorcore_count", "cores_per_chip"):
            v = getattr(info, name, None)
            if isinstance(v, int) and 1 <= v <= 8:
                return v
    except Exception:
        pass
    try:
        kind = jax.devices()[0].device_kind.lower()
        if "v7" in kind:
            return 2
    except Exception:
        pass
    return 1


# --------------------------------------------------------------------------- #
# Kernels
# --------------------------------------------------------------------------- #
def _resident_gram_kernel(feat_ref, g_ref, *, hw, tk, k_per_partial,
                          compute_dtype, ragged):
    """Resident-accumulator Gram: grid = (P, K).

    Axis 0 ("parallel") = one partial Gram per TensorCore; axis 1 ("arbitrary")
    walks the H*W column tiles.  The f32 output block is resident across axis 1
    and used directly as the accumulator.
    """
    k = pl.program_id(1)

    @pl.when(k == 0)
    def _():
        g_ref[...] = jnp.zeros_like(g_ref)

    # Cast under the DMA (VPU, free in this mem-bound kernel).
    f = feat_ref[...].astype(compute_dtype)                    # (BC_p, tk)
    if ragged:
        # Zero out-of-range (or duplicated, clamped) columns in-kernel instead
        # of padding the array in HBM.
        col0 = (pl.program_id(0) * k_per_partial + k) * tk
        col = col0 + lax.broadcasted_iota(jnp.int32, f.shape, 1)
        f = jnp.where(col < hw, f, jnp.zeros_like(f))

    # f @ f.T without materializing a transpose: contract dim 1 of both.
    g_ref[...] += lax.dot_general(
        f, f,
        dimension_numbers=(((1,), (1,)), ((), ())),
        preferred_element_type=jnp.float32)


def _tiled_gram_kernel(lhs_ref, rhs_ref, g_ref, *, hw, tk, compute_dtype, ragged):
    """Tiled-output Gram for very large BC: grid = (I, J, K), classic 3-D matmul."""
    k = pl.program_id(2)

    @pl.when(k == 0)
    def _():
        g_ref[...] = jnp.zeros_like(g_ref)

    a = lhs_ref[...].astype(compute_dtype)                     # (tm, tk)
    b = rhs_ref[...].astype(compute_dtype)                     # (tm, tk)
    if ragged:
        col = k * tk + lax.broadcasted_iota(jnp.int32, a.shape, 1)
        valid = col < hw
        a = jnp.where(valid, a, jnp.zeros_like(a))
        b = jnp.where(valid, b, jnp.zeros_like(b))

    g_ref[...] += lax.dot_general(
        a, b,
        dimension_numbers=(((1,), (1,)), ((), ())),
        preferred_element_type=jnp.float32)


# --------------------------------------------------------------------------- #
# Wrapper
# --------------------------------------------------------------------------- #
def weighted_gram(featmap, weight, *, compute_dtype=jnp.bfloat16,
                  _force_tiled=False, _bc_tile=None, _max_tk=None):
    """weight * (feat @ feat.T) / (B*C*H*W) with feat = featmap.reshape(B*C, H*W).

    The feature map is streamed from HBM in its own dtype (no wrapper-side cast
    or zero-pad copies); the cast to `compute_dtype` and the ragged-column mask
    happen inside the kernel.  Pass compute_dtype=jnp.float32 for exact parity
    with the PyTorch f32 reference.  `_force_tiled` / `_bc_tile` / `_max_tk`
    are test/tuning hooks only.
    """
    B, C, H, W = featmap.shape
    BC, HW = B * C, H * W

    feat = featmap.reshape(BC, HW)                 # free reshape, stays in HBM dtype
    itemsize = jnp.dtype(feat.dtype).itemsize

    # Pad rows only to the dtype sublane multiple and only if needed (usually a
    # no-op).  Padded rows are zero -> they add nothing to the Gram.
    sub = max(8, 32 // itemsize)                   # 8 for f32, 16 for bf16
    BC_p = _round_up(BC, sub)
    if BC_p != BC:
        feat = jnp.pad(feat, ((0, BC_p - BC), (0, 0)))

    vmem_cap = _vmem_capacity_bytes()
    budget = (vmem_cap * 3) // 4                   # ~48 MiB v7x, ~96 MiB v5e/v6e

    gram_bytes = 2 * BC_p * BC_p * 4               # double-buffered f32 output block
    raw_tk = (budget - gram_bytes) // (2 * BC_p * itemsize)
    use_tiled = _force_tiled or raw_tk < 512       # resident path needs a useful tk

    scale = jnp.float32(weight) / jnp.float32(B * C * H * W)

    if not use_tiled:
        # -------- resident-accumulator path (the common case) --------
        if _max_tk is not None:
            raw_tk = min(raw_tk, _max_tk)
        if raw_tk >= HW:
            tk = HW                                # one full-width tile (full-dim block)
        else:
            tk = max(128, min(32768, (raw_tk // 128) * 128))

        n_tiles = _cdiv(HW, tk)
        num_tc = _tensorcores_per_chip()
        P = max(1, min(num_tc, n_tiles))           # one partial Gram per TensorCore
        K = _cdiv(n_tiles, P)
        ragged = (P * K * tk != HW)
        last_tile = n_tiles - 1

        kernel = functools.partial(
            _resident_gram_kernel, hw=HW, tk=tk, k_per_partial=K,
            compute_dtype=compute_dtype, ragged=ragged)

        est = 2 * BC_p * tk * itemsize + gram_bytes
        vmem_limit = int(min(vmem_cap * 7 // 8,
                             max(2 * est + (4 << 20), 32 << 20)))

        # TODO(synk): consider pipeline_mode=pl.Buffered(3) on feat /
        # pl.Buffered(1) on the resident output and pltpu.CORE_PARALLEL on axis 0
        # after verifying the Mosaic dump on v7x.
        partials = pl.pallas_call(
            kernel,
            out_shape=jax.ShapeDtypeStruct((P, BC_p, BC_p), jnp.float32),
            grid_spec=pltpu.PrefetchScalarGridSpec(
                num_scalar_prefetch=0,
                grid=(P, K),
                in_specs=[
                    # Partial p owns column tiles [p*K, (p+1)*K); the clamp keeps
                    # extra tiles in-bounds, the in-kernel mask zeroes them.
                    pl.BlockSpec(
                        (BC_p, tk),
                        lambda p, k: (0, jnp.minimum(p * K + k, last_tile))),
                ],
                out_specs=pl.BlockSpec((None, BC_p, BC_p), lambda p, k: (p, 0, 0)),
            ),
            compiler_params=pltpu.CompilerParams(
                dimension_semantics=("parallel", "arbitrary"),
                vmem_limit_bytes=vmem_limit),
        )(feat)
        g = jnp.sum(partials, axis=0) if P > 1 else partials[0]
    else:
        # -------- tiled-output path: BC too large for a resident Gram block ----
        tm = _bc_tile if _bc_tile is not None else 512
        tm = min(tm, _round_up(BC_p, 128))
        raw_tk = (budget - 2 * tm * tm * 4) // (4 * tm * itemsize)
        if _max_tk is not None:
            raw_tk = min(raw_tk, _max_tk)
        if raw_tk >= HW:
            tk = HW
        else:
            tk = max(128, min(16384, (raw_tk // 128) * 128))

        I = _cdiv(BC_p, tm)
        K = _cdiv(HW, tk)
        ragged = (K * tk != HW)

        kernel = functools.partial(
            _tiled_gram_kernel, hw=HW, tk=tk,
            compute_dtype=compute_dtype, ragged=ragged)

        est = 4 * tm * tk * itemsize + 2 * tm * tm * 4
        vmem_limit = int(min(vmem_cap * 7 // 8,
                             max(2 * est + (4 << 20), 32 << 20)))

        g = pl.pallas_call(
            kernel,
            out_shape=jax.ShapeDtypeStruct((BC_p, BC_p), jnp.float32),
            grid_spec=pltpu.PrefetchScalarGridSpec(
                num_scalar_prefetch=0,
                grid=(I, I, K),
                in_specs=[
                    pl.BlockSpec((tm, tk), lambda i, j, k: (i, k)),
                    pl.BlockSpec((tm, tk), lambda i, j, k: (j, k)),
                ],
                out_specs=pl.BlockSpec((tm, tm), lambda i, j, k: (i, j)),
            ),
            compiler_params=pltpu.CompilerParams(
                dimension_semantics=("parallel", "parallel", "arbitrary"),
                vmem_limit_bytes=vmem_limit),
        )(feat, feat)          # same buffer passed twice; no extra HBM copy

    g = g * scale
    return g[:BC, :BC]


class StyleLoss:
    """JAX/Pallas equivalent of the PyTorch styleLoss module."""

    def __init__(self, target_featmap, weight, *, compute_dtype=jnp.bfloat16):
        self.weight = float(weight)
        self.compute_dtype = compute_dtype
        # target = calGram(target).detach() * weight
        self.target = weighted_gram(target_featmap, self.weight,
                                    compute_dtype=compute_dtype)

    def __call__(self, x):
        # forward(): output = input.clone(); G = calGram(input) * weight;
        # loss = MSELoss()(G, target); return output
        self.output = x
        self.G = weighted_gram(x, self.weight, compute_dtype=self.compute_dtype)
        self.loss = jnp.mean((self.G - self.target) ** 2)   # true (BC)^2 divisor
        # TODO(synk): backward()/retain_graph has no kernel equivalent; use jax.grad.
        return self.output


# --------------------------------------------------------------------------- #
# References and tests
# --------------------------------------------------------------------------- #
def _gram_ref(featmap, weight, feat_dtype=jnp.float32):
    B, C, H, W = featmap.shape
    f = featmap.reshape(B * C, H * W).astype(feat_dtype).astype(jnp.float32)
    g = jnp.matmul(f, f.T, precision=lax.Precision.HIGHEST)
    return g * (jnp.float32(weight) / jnp.float32(B * C * H * W))


def _reference_forward(featmap, target_featmap, weight, feat_dtype=jnp.float32):
    target = _gram_ref(target_featmap, weight, feat_dtype)
    G = _gram_ref(featmap, weight, feat_dtype)
    loss = jnp.mean((G - target) ** 2)
    return G, loss


if __name__ == "__main__":
    key = jax.random.PRNGKey(0)
    k1, k2, k3, k4, k5 = jax.random.split(key, 5)

    # 1) Module semantics at the spec's small shape (bf16 MXU operands, f32 acc).
    B, C, H, W = 2, 4, 16, 16
    weight = 1000.0
    target_featmap = jax.random.normal(k1, (B, C, H, W), dtype=jnp.float32)
    x = jax.random.normal(k2, (B, C, H, W), dtype=jnp.float32)

    module = StyleLoss(target_featmap, weight)
    out = jax.block_until_ready(module(x))
    G = jax.block_until_ready(module.G)
    loss = jax.block_until_ready(module.loss)

    assert out.shape == x.shape and bool(jnp.allclose(out, x))
    assert G.shape == (B * C, B * C)

    G_bf, loss_bf = _reference_forward(x, target_featmap, weight, feat_dtype=jnp.bfloat16)
    assert jnp.allclose(G, G_bf, rtol=1e-4, atol=1e-4), "G mismatch vs bf16 reference"
    assert jnp.allclose(loss, loss_bf, rtol=1e-3), "loss mismatch vs bf16 reference"
    G_f32, loss_f32 = _reference_forward(x, target_featmap, weight)
    assert jnp.allclose(G, G_f32, rtol=2e-2, atol=0.5), "G drifted vs f32 reference"
    assert jnp.allclose(loss, loss_f32, rtol=5e-2), "loss drifted vs f32 reference"

    # 2) float32 parity path.
    g32 = jax.block_until_ready(weighted_gram(x, weight, compute_dtype=jnp.float32))
    assert jnp.allclose(g32, G_f32, rtol=5e-3, atol=5e-3), "f32 path mismatch"

    # 3) Ragged H*W: forces a multi-tile reduction and the in-kernel column mask.
    fm = jax.random.normal(k3, (2, 4, 15, 15), dtype=jnp.float32)      # HW = 225
    g = jax.block_until_ready(
        weighted_gram(fm, weight, compute_dtype=jnp.float32, _max_tk=128))
    assert jnp.allclose(g, _gram_ref(fm, weight), rtol=5e-3, atol=5e-3), "ragged-HW mismatch"

    # 4) BC not a multiple of the sublane count (row-pad branch).
    fm = jax.random.normal(k4, (1, 3, 16, 16), dtype=jnp.float32)      # BC = 3
    g = jax.block_until_ready(weighted_gram(fm, weight, compute_dtype=jnp.float32))
    assert jnp.allclose(g, _gram_ref(fm, weight), rtol=5e-3, atol=5e-3), "row-pad mismatch"

    # 5) Tiled-output fallback (large-BC path), forced small for the test.
    fm = jax.random.normal(k5, (2, 128, 16, 10), dtype=jnp.float32)    # BC=256, HW=160
    g = jax.block_until_ready(
        weighted_gram(fm, weight, compute_dtype=jnp.float32,
                      _force_tiled=True, _bc_tile=128, _max_tk=128))
    assert jnp.allclose(g, _gram_ref(fm, weight), rtol=5e-3, atol=5e-3), "tiled-path mismatch"

    print("KERNEL_OK")
</pallas_src>

<mosaic_0001>
module attributes {stable_mosaic.version = 11 : i64} {
  func.func @_resident_gram_kernel(%arg0: i32, %arg1: i32, %arg2: memref<8x256xf32, #tpu.memory_space<vmem>>, %arg3: memref<1x8x8xf32, #tpu.memory_space<vmem>>) attributes {dimension_semantics = [#tpu.dimension_semantics<parallel>, #tpu.dimension_semantics<arbitrary>], iteration_bounds = array<i64: 1, 1>, scalar_prefetch = 0 : i64, scratch_operands = 0 : i64, tpu.core_type = #tpu.core_type<tc>, window_params = [{transform_indices = @transform_0, window_bounds = array<i64: 8, 256>}, {transform_indices = @transform_1, window_bounds = array<i64: 1, 8, 8>}]} {
    %c0_i32 = arith.constant 0 : i32
    %0 = arith.cmpi eq, %arg1, %c0_i32 : i32
    %1 = arith.extui %0 : i1 to i32
    %c0_i32_0 = arith.constant 0 : i32
    %2 = arith.cmpi ne, %1, %c0_i32_0 : i32
    scf.if %2 {
      %cst_8 = arith.constant 0.000000e+00 : f32
      %12 = vector.broadcast %cst_8 : f32 to vector<8x8xf32>
      %c0_9 = arith.constant 0 : index
      %c0_10 = arith.constant 0 : index
      %c0_11 = arith.constant 0 : index
      %13 = vector.load %arg3[%c0_9, %c0_10, %c0_11] : memref<1x8x8xf32, #tpu.memory_space<vmem>>, vector<1x8x8xf32>
      %14 = vector.shape_cast %13 : vector<1x8x8xf32> to vector<8x8xf32>
      %15 = vector.shape_cast %12 : vector<8x8xf32> to vector<1x8x8xf32>
      tpu.vector_store %arg3[%c0_9, %c0_10, %c0_11], %15 {strides = array<i32>} : memref<1x8x8xf32, #tpu.memory_space<vmem>>, vector<1x8x8xf32>,
    } else {
    }
    %c0 = arith.constant 0 : index
    %c0_1 = arith.constant 0 : index
    %3 = vector.load %arg2[%c0, %c0_1] : memref<8x256xf32, #tpu.memory_space<vmem>>, vector<8x256xf32>
    %4 = arith.truncf %3 : vector<8x256xf32> to vector<8x256xbf16>
    %c0_2 = arith.constant 0 : index
    %c0_3 = arith.constant 0 : index
    %c0_4 = arith.constant 0 : index
    %5 = vector.load %arg3[%c0_2, %c0_3, %c0_4] : memref<1x8x8xf32, #tpu.memory_space<vmem>>, vector<1x8x8xf32>
    %6 = vector.shape_cast %5 : vector<1x8x8xf32> to vector<8x8xf32>
    %cst = arith.constant dense<0.000000e+00> : vector<8x8xf32>
    %7 = tpu.matmul %4, %4, %cst {dimension_numbers = #tpu.dot_dimension_numbers<[1], [1], [0], [0], [0, 0, 1, 0], [], []>} : vector<8x256xbf16>, vector<8x256xbf16>, vector<8x8xf32> -> vector<8x8xf32>
    %8 = arith.addf %6, %7 : vector<8x8xf32>
    %c0_5 = arith.constant 0 : index
    %c0_6 = arith.constant 0 : index
    %c0_7 = arith.constant 0 : index
    %9 = vector.load %arg3[%c0_5, %c0_6, %c0_7] : memref<1x8x8xf32, #tpu.memory_space<vmem>>, vector<1x8x8xf32>
    %10 = vector.shape_cast %9 : vector<1x8x8xf32> to vector<8x8xf32>
    %11 = vector.shape_cast %8 : vector<8x8xf32> to vector<1x8x8xf32>
    tpu.vector_store %arg3[%c0_5, %c0_6, %c0_7], %11 {strides = array<i32>} : memref<1x8x8xf32, #tpu.memory_space<vmem>>, vector<1x8x8xf32>,
    return
  }
  func.func @transform_0(%arg0: i32, %arg1: i32) -> (i32, i32) {
    %c1_i32 = arith.constant 1 : i32
    %0 = arith.muli %arg0, %c1_i32 : i32
    %1 = arith.addi %0, %arg1 : i32
    %c0_i32 = arith.constant 0 : i32
    %2 = arith.minsi %1, %c0_i32 : i32
    %c0_i32_0 = arith.constant 0 : i32
    %c0_i32_1 = arith.constant 0 : i32
    return %c0_i32_0, %2 : i32, i32
  }
  func.func @transform_1(%arg0: i32, %arg1: i32) -> (i32, i32, i32) {
    %c0_i32 = arith.constant 0 : i32
    %c0_i32_0 = arith.constant 0 : i32
    %c0_i32_1 = arith.constant 0 : i32
    return %arg0, %c0_i32, %c0_i32_0 : i32, i32, i32
  }
}

</mosaic_0001>

<llo_original>
// kernel: tpu_custom_call.1
$region0: #{tpu_custom_call.1}
  #allocation0 [shape = 'u32[]', space=smem, size = 0x4, offset = 0x4, fixed_abs, tag = 'smem constant byte address 0x4 - core index']
  #allocation1 [shape = 'u32[144,128]{1,0:T(1,128)}', space=vmem, size = 0x12000, scoped, tag = 'internal scratch']
  %s0 = inlined_call_operand.hbm [shape: f32[8,256], index: 0, kind: input, shape index: {}]
  %s1 = inlined_call_operand.hbm [shape: f32[1,8,8], index: 1, kind: output, shape index: {}]
  %s2 = sld [smem:[#allocation0]]
  $region22: #{tpu_custom_call.1} parent=0
    _
  %s4 = ssub.s32 1, %s2
  %s5 = scalar_select 0, %s4, %s2
  $region1: #{tpu_custom_call.1} parent=0
    #allocation2 [shape = 'u8[8192]{0}', space=vmem, size = 0x2000, scoped, tag = 'input window, operand 0, single buffered']
    #allocation3 [shape = 's32[1]{0}', space=sflag, size = 0x4, scoped, tag = 'scoped memory for tpu_custom_call.1']
    #allocation4 [shape = 's32[1]{0}', space=sflag, size = 0x4, scoped, tag = 'scoped memory for tpu_custom_call.1']
    #allocation5 [shape = 'u8[4096]{0}', space=vmem, size = 0x1000, scoped, tag = 'output window, operand 0, single buffered']
    %6 = vsyncpa [#allocation3], 0
    %7 = vsyncpa [#allocation4], 0
    // Predicated region
    $region2: #{tpu_custom_call.1} parent=1 // pred_check
      _
    $region3: #{tpu_custom_call.1} parent=1 // pred_check_branch
      %9 = sbr.rel (0) target = $region5
    $region4: #{tpu_custom_call.1} parent=1 // pred_region
      %s10 = sadd.s32 0, 0
      %p11 = scmp.lt.s32.totalorder %s10, 0
      %s12 = scalar_select %p11, %s10, 0
      %s13 = smul.u32 2, %s12
      %s15 = ssub.s32 256, 256
      %16 = vsyncadd [#allocation3], %s15
      %s17 = smul.addr %s13, 128
      %s18 = scalar_lea.hbm %s0, %s17
      %s20 = sshll.u32 [#allocation2], 4
      %s21 = int_to_ptr.vmem [resolvable:$true] %s20
      %23 = dma.hbm_to_vmem [thread:$0]  %s18, 256, %s21, [#allocation3]
    $region5: #{tpu_custom_call.1} parent=1 // pred_fallthru
      _
    // Predicated region
    $region6: #{tpu_custom_call.1} parent=1 // pred_check
      _
    $region7: #{tpu_custom_call.1} parent=1 // pred_check_branch
      %25 = sbr.rel (0) target = $region9
    $region8: #{tpu_custom_call.1} parent=1 // pred_region
      %26 = dma.done [#allocation3], 256
    $region9: #{tpu_custom_call.1} parent=1 // pred_fallthru
      _
    %s27 = sadd.s32 0, 0
    %p28 = scmp.lt.s32.totalorder %s27, 0
    %s29 = scalar_select %p28, %s27, 0
    %s30 = smul.u32 2, %s29
    %p32 = scmp.eq.s32.totalorder 0, 0
    // Predicated region
    $region10: #{tpu_custom_call.1} parent=1 // pred_check
      %p33 = pneg %p32
    $region11: #{tpu_custom_call.1} parent=1 // pred_check_branch
      %35 = sbr.rel (%p33) target = $region13
    $region12: #{tpu_custom_call.1} parent=1 // pred_region
      %vm36 = vcmask 64512
      %37 = vst.msk [vmem:[#allocation5] sm:$0xff] %vm36, 0.0
    $region13: #{tpu_custom_call.1} parent=1 // pred_fallthru
      _
    %v38 = vld [vmem:[#allocation2] sm:$0xff]
    %v39 = vld [vmem:[#allocation2 + $0x8] sm:$0xff]
    %v40 = vpack.c.bf16 %v38, %v38
    %v41 = vpack.c.bf16 %v39, %v39
    %v42 = vld [vmem:[#allocation5] sm:$0xff]
    %43 = vmatprep.subr.bf16.mxu0 0
    %44 = vmatpush1.bf16.xpose.msra.mxu0 0
    %45 = vmatprep.subr.bf16.mxu0 0
    %46 = vmatpush1.bf16.xpose.msra.mxu0 0
    %47 = vmatprep.subr.bf16.mxu0 0
    %48 = vmatpush1.bf16.xpose.msra.mxu0 0
    %49 = vmatprep.subr.bf16.mxu0 0
    %50 = vmatpush1.bf16.xpose.msra.mxu0 0
    %51 = vmatprep.subr.bf16.mxu0 0
    %52 = vmatpush1.bf16.xpose.msra.mxu0 0
    %53 = vmatprep.subr.bf16.mxu0 0
    %54 = vmatpush1.bf16.xpose.msra.mxu0 0
    %55 = vmatprep.subr.bf16.mxu0 0
    %56 = vmatpush1.bf16.xpose.msra.mxu0 0
    %57 = vmatprep.subr.bf16.mxu0 %v41
    %58 = vmatpush1.bf16.xpose.msra.mxu0 %v40
    %59 = vmatprep.subr.bf16.mxu0 0
    %60 = vmatpush2.bf16.xpose.msra.mxu0 0
    %61 = vmatprep.subr.bf16.mxu0 0
    %62 = vmatpush2.bf16.xpose.msra.mxu0 0
    %63 = vmatprep.subr.bf16.mxu0 0
    %64 = vmatpush2.bf16.xpose.msra.mxu0 0
    %65 = vmatprep.subr.bf16.mxu0 0
    %66 = vmatpush2.bf16.xpose.msra.mxu0 0
    %67 = vmatprep.subr.bf16.mxu0 0
    %68 = vmatpush2.bf16.xpose.msra.mxu0 0
    %69 = vmatprep.subr.bf16.mxu0 0
    %70 = vmatpush2.bf16.xpose.msra.mxu0 0
    %71 = vmatprep.subr.bf16.mxu0 0
    %72 = vmatpush2.bf16.xpose.msra.mxu0 0
    %73 = vmatprep.subr.bf16.mxu0 0
    %74 = vmatpush2.bf16.xpose.msra.mxu0 0
    %75 = vmatprep.mubr.bf16.mxu0 %v41
    %76 = vmatmul.mubr.bf16.gmra.mxu0 %v40
    %v77 = vpop.f32.mrf.mxu0
    %v78 = vadd.f32 0.0, %v77
    %v79 = vpop.f32.mrf.mxu0
    %v80 = vpop.f32.mrf.mxu0
    %v81 = vpop.f32.mrf.mxu0
    %82 = vdwg.mxu0
    %v83 = vadd.f32 %v42, %v78
    %vm84 = vcmask 64512
    %85 = vst.msk [vmem:[#allocation5] sm:$0xff] %vm84, %v83
    // Predicated region
    $region14: #{tpu_custom_call.1} parent=1 // pred_check
      _
    $region15: #{tpu_custom_call.1} parent=1 // pred_check_branch
      %87 = sbr.rel (0) target = $region17
    $region16: #{tpu_custom_call.1} parent=1 // pred_region
      %s89 = ssub.s32 128, 128
      %90 = vsyncadd [#allocation4], %s89
      %s92 = sshll.u32 [#allocation5], 4
      %s93 = int_to_ptr.vmem [resolvable:$true] %s92
      %95 = dma.vmem_to_hbm [thread:$0]  %s93, 128, %s1, [#allocation4]
    $region17: #{tpu_custom_call.1} parent=1 // pred_fallthru
      _
    // Predicated region
    $region18: #{tpu_custom_call.1} parent=1 // pred_check
      _
    $region19: #{tpu_custom_call.1} parent=1 // pred_check_branch
      %97 = sbr.rel (0) target = $region21
    $region20: #{tpu_custom_call.1} parent=1 // pred_region
      %98 = dma.done [#allocation4], 128
    $region21: #{tpu_custom_call.1} parent=1 // pred_fallthru
      _
    %99 = vsyncpa [#allocation3], 1
    %100 = vsyncpa [#allocation4], 1

</llo_original>
